<compile_context>
chip_gen: v6e
topology: v6e:2x2x1
jax: 0.10.0
libtpu: 0.0.40
codegen_flags: <defaults>
</compile_context>

<pallas_src>
import functools

import jax
import jax.numpy as jnp
import numpy as np
from jax.experimental import pallas as pl
from jax.experimental.pallas import tpu as pltpu


# ----------------------------------------------------------------------------
# Small helpers
# ----------------------------------------------------------------------------
def _round_up(x, m):
    return (x + m - 1) // m * m


def _pad_rows(a, rows):
    if a.shape[0] == rows:
        return a
    return jnp.pad(a, ((0, rows - a.shape[0]), (0, 0)))


@functools.lru_cache(maxsize=1)
def _vmem_capacity_bytes():
    # v7x has only 64 MiB of VMEM per TensorCore; never request more than the
    # chip physically has.  Conservative fallback if the query is unavailable.
    try:
        return int(pltpu.get_tpu_info().vmem_capacity_bytes)
    except Exception:
        return 64 << 20


def _compiler_params(n_grid_axes, vmem_need_bytes):
    ceiling = (_vmem_capacity_bytes() * 3) // 4            # leave headroom
    limit = int(min(ceiling, max(32 << 20, 2 * vmem_need_bytes + (4 << 20))))
    return pltpu.CompilerParams(
        dimension_semantics=("parallel",) * n_grid_axes,
        vmem_limit_bytes=limit)


def _const_spec(block_shape, index_map):
    """BlockSpec for a grid-invariant operand (weights / biases).

    The block index never changes, so a single VMEM buffer suffices: halves
    weight residency (important under v7x's 64 MiB VMEM) and frees room for
    larger M tiles everywhere.
    """
    if hasattr(pl, "Buffered"):
        try:
            return pl.BlockSpec(block_shape, index_map,
                                pipeline_mode=pl.Buffered(1))
        except TypeError:            # older jax without pipeline_mode kwarg
            pass
    return pl.BlockSpec(block_shape, index_map)


# ----------------------------------------------------------------------------
# Kernel 1: out = relu?(x @ w_scaled + bias)     (BN scale folded into w)
# ----------------------------------------------------------------------------
def _mm_bias_act_kernel(x_ref, w_ref, b_ref, o_ref, *, relu):
    acc = jnp.dot(x_ref[...], w_ref[...], preferred_element_type=jnp.float32)
    out = acc + b_ref[...]
    if relu:
        out = jnp.maximum(out, 0.0)
    o_ref[...] = out.astype(o_ref.dtype)


def fused_matmul_bias_act(x2d, w, bias, *, relu=True, out_dtype=jnp.float32,
                          tm=512):
    """x2d: (M, K) flattened pixels x input channels; w already BN-scaled."""
    M, K = x2d.shape
    Kw, C = w.shape
    assert K == Kw
    tm = min(tm, M)
    Mp = _round_up(M, tm)                       # pad rows instead of asserting
    xp = _pad_rows(x2d, Mp)
    b2 = bias.reshape(1, C).astype(jnp.float32)

    isz = jnp.dtype(x2d.dtype).itemsize
    vmem_need = 2 * tm * (K + C) * isz + K * C * isz
    cost = pl.CostEstimate(flops=2 * Mp * K * C, transcendentals=0,
                           bytes_accessed=(Mp * K + K * C + Mp * C) * isz)

    out = pl.pallas_call(
        functools.partial(_mm_bias_act_kernel, relu=relu),
        out_shape=jax.ShapeDtypeStruct((Mp, C), out_dtype),
        grid_spec=pltpu.PrefetchScalarGridSpec(
            num_scalar_prefetch=0,
            grid=(Mp // tm,),
            in_specs=[
                pl.BlockSpec((tm, K), lambda i: (i, 0)),   # activation tile
                _const_spec((K, C), lambda i: (0, 0)),     # scaled weight
                _const_spec((1, C), lambda i: (0, 0)),     # folded BN bias
            ],
            out_specs=pl.BlockSpec((tm, C), lambda i: (i, 0)),
        ),
        compiler_params=_compiler_params(1, vmem_need),
        cost_estimate=cost,
    )(xp, w, b2)
    return out[:M] if Mp != M else out


# ----------------------------------------------------------------------------
# Kernel 2: conv3 (1x1) + bn3 + shortcut + ReLU, fully fused.
#   projection: out = relu(h@w3s + xs@wss + (b3+bs))    (two dots per tile)
#   identity:   out = relu(h@w3s + b3 + xs)
# ----------------------------------------------------------------------------
def _mm_res_proj_kernel(h_ref, w3_ref, x_ref, ws_ref, b_ref, o_ref):
    acc = jnp.dot(h_ref[...], w3_ref[...], preferred_element_type=jnp.float32)
    acc = acc + jnp.dot(x_ref[...], ws_ref[...],
                        preferred_element_type=jnp.float32)
    o_ref[...] = jnp.maximum(acc + b_ref[...], 0.0).astype(o_ref.dtype)


def _mm_res_id_kernel(h_ref, w3_ref, r_ref, b_ref, o_ref):
    acc = jnp.dot(h_ref[...], w3_ref[...], preferred_element_type=jnp.float32)
    acc = acc + b_ref[...] + r_ref[...].astype(jnp.float32)
    o_ref[...] = jnp.maximum(acc, 0.0).astype(o_ref.dtype)


def fused_conv3_residual(h2d, w3, b3, sc2d, ws=None, bs=None, *,
                         out_dtype=jnp.float32, tm=512):
    # TODO(synk): for late ResNet stages (K3=512, Ks=1024, C=2048) add a
    # K-reduction grid axis ("arbitrary") with a VMEM f32 accumulator so the
    # weights never need to be fully resident (v7x 64 MiB budget).
    M, K3 = h2d.shape
    C = w3.shape[1]
    project = ws is not None
    tm = min(tm, M)
    Mp = _round_up(M, tm)
    hp = _pad_rows(h2d, Mp)
    scp = _pad_rows(sc2d, Mp)

    isz = jnp.dtype(h2d.dtype).itemsize
    h_spec = pl.BlockSpec((tm, K3), lambda i: (i, 0))
    w3_spec = _const_spec((K3, C), lambda i: (0, 0))
    vec_spec = _const_spec((1, C), lambda i: (0, 0))
    out_spec = pl.BlockSpec((tm, C), lambda i: (i, 0))

    if project:
        Ks = sc2d.shape[1]
        b_comb = (b3 + bs).reshape(1, C).astype(jnp.float32)
        kernel = _mm_res_proj_kernel
        in_specs = [h_spec, w3_spec,
                    pl.BlockSpec((tm, Ks), lambda i: (i, 0)),
                    _const_spec((Ks, C), lambda i: (0, 0)),
                    vec_spec]
        args = (hp, w3, scp, ws, b_comb)
        flops = 2 * Mp * C * (K3 + Ks)
        bytes_acc = (Mp * (K3 + Ks + C) + C * (K3 + Ks)) * isz
        vmem_need = 2 * tm * (K3 + Ks + C) * isz + C * (K3 + Ks) * isz
    else:
        b3b = b3.reshape(1, C).astype(jnp.float32)
        kernel = _mm_res_id_kernel
        in_specs = [h_spec, w3_spec,
                    pl.BlockSpec((tm, C), lambda i: (i, 0)),
                    vec_spec]
        args = (hp, w3, scp, b3b)
        flops = 2 * Mp * C * K3
        bytes_acc = (Mp * (K3 + 2 * C) + C * K3) * isz
        vmem_need = 2 * tm * (K3 + 2 * C) * isz + C * K3 * isz

    out = pl.pallas_call(
        kernel,
        out_shape=jax.ShapeDtypeStruct((Mp, C), out_dtype),
        grid_spec=pltpu.PrefetchScalarGridSpec(
            num_scalar_prefetch=0, grid=(Mp // tm,),
            in_specs=in_specs, out_specs=out_spec),
        compiler_params=_compiler_params(1, vmem_need),
        cost_estimate=pl.CostEstimate(flops=flops, transcendentals=0,
                                      bytes_accessed=bytes_acc),
    )(*args)
    return out[:M] if Mp != M else out


# ----------------------------------------------------------------------------
# Kernel 3: 3x3 conv (pad=1, stride s) + folded-BN bias + ReLU.
#
# Phases are flattened to (rows, Cin); every tap is a *row-shifted slab* of a
# phase -> one accumulating MXU dot, with no in-kernel 2-D windowing/reshape
# relayouts.  Output columns j >= Wo of each row are garbage and are sliced
# off wrapper-side (a few percent of wasted FLOPs).
# ----------------------------------------------------------------------------
def _conv3x3_bias_relu_kernel(*refs, tap_info, n_phases, out_rows, use_roll):
    phase_refs = refs[:n_phases]
    w_ref = refs[n_phases]
    b_ref = refs[n_phases + 1]
    o_ref = refs[n_phases + 2]
    total_rows = phase_refs[0].shape[0]

    acc = None
    for t, (p, shift) in enumerate(tap_info):
        if shift % 8 == 0 or not use_roll:
            # Sublane-aligned shift (or packed dtype): plain row-range read.
            x = phase_refs[p][pl.ds(shift, out_rows), :]
        else:
            # Unaligned f32 shift: realize it as a sublane rotation (XLU slot)
            # followed by an aligned prefix read -- keeps the vld/vst slots
            # free of masked-load / relayout copies.
            x = pltpu.roll(phase_refs[p][...], (-shift) % total_rows,
                           axis=0)[:out_rows]
        d = jnp.dot(x, w_ref[t], preferred_element_type=jnp.float32)
        acc = d if acc is None else acc + d
    o_ref[...] = jnp.maximum(acc + b_ref[...], 0.0).astype(o_ref.dtype)


def conv3x3_bias_relu(x_nhwc, w9, bias, stride, *, out_dtype=jnp.float32):
    """w9: (9, Cin, Cout), tap order ky*3+kx, BN scale already folded in."""
    N, H, W, C = x_nhwc.shape
    Cout = w9.shape[-1]
    s = stride
    Ho = (H + 2 - 3) // s + 1
    Wo = (W + 2 - 3) // s + 1

    # One wrapper-side gather: pad + split into s*s phases so every tap is a
    # contiguous (row-shifted) slab of exactly one phase.
    xp = jnp.pad(x_nhwc, ((0, 0), (1, 1), (1, 1), (0, 0)))
    raw_phases = [xp[:, a::s, b::s, :] for a in range(s) for b in range(s)]

    # tap (ky, kx) -> (phase index, row offset, col offset) inside that phase.
    taps = [((ky % s) * s + (kx % s), ky // s, kx // s)
            for ky in range(3) for kx in range(3)]
    oy_max = max(oy for _, oy, _ in taps)
    ox_max = max(ox for _, _, ox in taps)

    # Common phase geometry: widest phase width, and just enough rows that the
    # largest shifted slab stays in bounds; pad total rows to a multiple of 8
    # so the in-kernel sublane roll / slices are layout friendly.
    Wp = max(p.shape[2] for p in raw_phases)
    Hp = Ho + oy_max + (1 if ox_max > 0 else 0)
    out_rows = Ho * Wp
    total_rows = _round_up(Hp * Wp, 8)

    phases = []
    for ph in raw_phases:
        ph = ph[:, :Hp]
        ph = jnp.pad(ph, ((0, 0), (0, Hp - ph.shape[1]),
                          (0, Wp - ph.shape[2]), (0, 0)))
        ph = ph.reshape(N, Hp * Wp, C)
        phases.append(jnp.pad(ph, ((0, 0), (0, total_rows - Hp * Wp), (0, 0))))

    tap_info = tuple((p, oy * Wp + ox) for (p, oy, ox) in taps)
    assert max(sh for _, sh in tap_info) + out_rows <= total_rows

    isz = jnp.dtype(x_nhwc.dtype).itemsize
    w9 = w9.astype(x_nhwc.dtype)
    b2 = bias.reshape(1, Cout).astype(jnp.float32)

    in_specs = [pl.BlockSpec((None, total_rows, C), lambda n: (n, 0, 0))
                for _ in phases]
    in_specs += [_const_spec((9, C, Cout), lambda n: (0, 0, 0)),
                 _const_spec((1, Cout), lambda n: (0, 0))]
    out_spec = pl.BlockSpec((None, out_rows, Cout), lambda n: (n, 0, 0))

    phase_bytes = len(phases) * total_rows * C * isz
    vmem_need = (2 * phase_bytes + 9 * C * Cout * isz
                 + 2 * out_rows * Cout * jnp.dtype(out_dtype).itemsize)
    cost = pl.CostEstimate(
        flops=2 * N * out_rows * 9 * C * Cout, transcendentals=0,
        bytes_accessed=N * (phase_bytes + out_rows * Cout * isz)
        + 9 * C * Cout * isz)

    out = pl.pallas_call(
        functools.partial(_conv3x3_bias_relu_kernel, tap_info=tap_info,
                          n_phases=len(phases), out_rows=out_rows,
                          use_roll=(isz >= 4)),
        out_shape=jax.ShapeDtypeStruct((N, out_rows, Cout), out_dtype),
        grid_spec=pltpu.PrefetchScalarGridSpec(
            num_scalar_prefetch=0, grid=(N,),
            in_specs=in_specs, out_specs=out_spec),
        compiler_params=_compiler_params(1, vmem_need),
        cost_estimate=cost,
    )(*phases, w9, b2)

    # Drop the garbage columns (j in [Wo, Wp)) produced by the whole-row taps.
    return out.reshape(N, Ho, Wp, Cout)[:, :, :Wo, :]


# ----------------------------------------------------------------------------
# Bottleneck forward (NCHW in / NCHW out, like PyTorch)
# ----------------------------------------------------------------------------
def bottleneck_forward(x_nchw, p, stride, *, compute_dtype=jnp.bfloat16,
                       out_dtype=jnp.float32):
    """Inference-mode Bottleneck.  compute_dtype is the streaming/MXU dtype
    (bf16 by default; f32 accumulation everywhere); out_dtype controls the
    final writeback (set to bf16 when feeding another block)."""
    cdt = compute_dtype
    x = jnp.transpose(x_nchw, (0, 2, 3, 1)).astype(cdt)        # -> NHWC
    N, H, W, Cin = x.shape
    planes = p["w1"].shape[1]
    exp = p["w3"].shape[1]

    # Fold inference-mode BN scale into the conv weights (epilogue = +bias).
    w1 = (p["w1"] * p["s1"][None, :]).astype(cdt)
    w9 = (p["w2_hwio"] * p["s2"][None, None, None, :]
          ).reshape(9, planes, planes).astype(cdt)
    w3 = (p["w3"] * p["s3"][None, :]).astype(cdt)

    # conv1 (1x1) + bn1 + relu
    h = fused_matmul_bias_act(x.reshape(N * H * W, Cin), w1, p["b1"],
                              relu=True, out_dtype=cdt)
    h = h.reshape(N, H, W, planes)

    # conv2 (3x3, stride, pad=1) + bn2 + relu
    h = conv3x3_bias_relu(h, w9, p["b2"], stride, out_dtype=cdt)
    _, Ho, Wo, _ = h.shape
    h2d = h.reshape(N * Ho * Wo, planes)

    # conv3 (1x1) + bn3 + shortcut + relu, fused in one kernel.
    if stride != 1 or Cin != exp:
        ws = (p["ws"] * p["ss"][None, :]).astype(cdt)
        # TODO(synk): fold the stride-s subsample into the projection kernel's
        # index_map instead of this wrapper-side gather.
        xs = x[:, ::stride, ::stride, :].reshape(N * Ho * Wo, Cin)
        out2d = fused_conv3_residual(h2d, w3, p["b3"], xs, ws, p["bs"],
                                     out_dtype=out_dtype)
    else:
        res = x.reshape(N * Ho * Wo, Cin)
        out2d = fused_conv3_residual(h2d, w3, p["b3"], res,
                                     out_dtype=out_dtype)

    out = out2d.reshape(N, Ho, Wo, exp)
    return jnp.transpose(out, (0, 3, 1, 2))                    # -> NCHW


# ----------------------------------------------------------------------------
# Pure-JAX reference (for correctness check)
# ----------------------------------------------------------------------------
def reference_forward(x_nchw, p, stride, planes, in_planes):
    x = jnp.transpose(x_nchw, (0, 2, 3, 1))
    exp = 4 * planes

    def conv(x, w_hwio, s, pad):
        return jax.lax.conv_general_dilated(
            x, w_hwio, window_strides=(s, s), padding=pad,
            dimension_numbers=("NHWC", "HWIO", "NHWC"))

    o = conv(x, p["w1"].reshape(1, 1, in_planes, planes), 1, "VALID")
    o = jax.nn.relu(o * p["s1"] + p["b1"])
    o = conv(o, p["w2_hwio"], stride, [(1, 1), (1, 1)])
    o = jax.nn.relu(o * p["s2"] + p["b2"])
    o = conv(o, p["w3"].reshape(1, 1, planes, exp), 1, "VALID")
    o = o * p["s3"] + p["b3"]
    sc = conv(x, p["ws"].reshape(1, 1, in_planes, exp), stride, "VALID")
    sc = sc * p["ss"] + p["bs"]
    return jnp.transpose(jax.nn.relu(o + sc), (0, 3, 1, 2))


# ----------------------------------------------------------------------------
def make_params(key, in_planes, planes):
    exp = 4 * planes
    ks = jax.random.split(key, 16)
    eps = 1e-5

    def bn(kg, kb, km, kv, c):
        gamma = jax.random.normal(kg, (c,), jnp.float32) * 0.1 + 1.0
        beta = jax.random.normal(kb, (c,), jnp.float32) * 0.1
        mean = jax.random.normal(km, (c,), jnp.float32) * 0.1
        var = jax.random.uniform(kv, (c,), jnp.float32, 0.5, 1.5)
        scale = gamma / jnp.sqrt(var + eps)
        bias = beta - mean * scale
        return scale, bias

    p = {
        "w1": jax.random.normal(ks[0], (in_planes, planes), jnp.float32) * 0.1,
        "w2_hwio": jax.random.normal(ks[1], (3, 3, planes, planes),
                                     jnp.float32) * 0.1,
        "w3": jax.random.normal(ks[2], (planes, exp), jnp.float32) * 0.1,
        "ws": jax.random.normal(ks[3], (in_planes, exp), jnp.float32) * 0.1,
    }
    p["s1"], p["b1"] = bn(ks[4], ks[5], ks[6], ks[7], planes)
    p["s2"], p["b2"] = bn(ks[8], ks[9], ks[10], ks[11], planes)
    p["s3"], p["b3"] = bn(ks[12], ks[13], ks[14], ks[15], exp)
    kss = jax.random.split(ks[15], 4)
    p["ss"], p["bs"] = bn(kss[0], kss[1], kss[2], kss[3], exp)
    return p


if __name__ == "__main__":
    key = jax.random.PRNGKey(0)
    kx, kp = jax.random.split(key)

    in_planes, planes, stride = 4, 4, 2
    x = jax.random.normal(kx, (2, in_planes, 16, 16), jnp.float32)   # NCHW
    params = make_params(kp, in_planes, planes)

    ref = reference_forward(x, params, stride, planes, in_planes)

    # f32 path: tight check against the pure-JAX reference.
    out = bottleneck_forward(x, params, stride, compute_dtype=jnp.float32)
    out = jax.block_until_ready(out)
    assert out.shape == (2, 4 * planes, 8, 8), out.shape
    np.testing.assert_allclose(np.asarray(out), np.asarray(ref),
                               rtol=1e-3, atol=1e-3)

    # bf16 default path (f32 accumulation / epilogue inside the kernels).
    # Note: the residual is also streamed in bf16, so only a loose match to
    # the f32 reference is expected (acceptable for inference).
    out_bf16 = bottleneck_forward(x, params, stride)
    out_bf16 = jax.block_until_ready(out_bf16)
    assert out_bf16.shape == (2, 4 * planes, 8, 8), out_bf16.shape
    np.testing.assert_allclose(np.asarray(out_bf16), np.asarray(ref),
                               rtol=1e-1, atol=1e-1)

    print("KERNEL_OK")
</pallas_src>

<mosaic_0001>
module attributes {stable_mosaic.version = 11 : i64} {
  func.func @_mm_bias_act_kernel(%arg0: i32, %arg1: memref<512x4xf32, #tpu.memory_space<vmem>>, %arg2: memref<4x4xf32, #tpu.memory_space<vmem>>, %arg3: memref<1x4xf32, #tpu.memory_space<vmem>>, %arg4: memref<512x4xf32, #tpu.memory_space<vmem>>) attributes {dimension_semantics = [#tpu.dimension_semantics<parallel>], iteration_bounds = array<i64: 1>, scalar_prefetch = 0 : i64, scratch_operands = 0 : i64, tpu.core_type = #tpu.core_type<tc>, window_params = [{transform_indices = @transform_0, window_bounds = array<i64: 512, 4>}, {pipeline_mode = #tpu.pipeline_mode<synchronous>, transform_indices = @transform_1, window_bounds = array<i64: 4, 4>}, {pipeline_mode = #tpu.pipeline_mode<synchronous>, transform_indices = @transform_2, window_bounds = array<i64: 1, 4>}, {transform_indices = @transform_3, window_bounds = array<i64: 512, 4>}]} {
    %c0 = arith.constant 0 : index
    %c0_0 = arith.constant 0 : index
    %0 = vector.load %arg1[%c0, %c0_0] : memref<512x4xf32, #tpu.memory_space<vmem>>, vector<512x4xf32>
    %c0_1 = arith.constant 0 : index
    %c0_2 = arith.constant 0 : index
    %1 = vector.load %arg2[%c0_1, %c0_2] : memref<4x4xf32, #tpu.memory_space<vmem>>, vector<4x4xf32>
    %cst = arith.constant dense<0.000000e+00> : vector<512x4xf32>
    %2 = tpu.matmul %0, %1, %cst {dimension_numbers = #tpu.dot_dimension_numbers<[1], [0], [0], [1], [0, 0, 1, 1], [], []>} : vector<512x4xf32>, vector<4x4xf32>, vector<512x4xf32> -> vector<512x4xf32>
    %c0_3 = arith.constant 0 : index
    %c0_4 = arith.constant 0 : index
    %3 = vector.load %arg3[%c0_3, %c0_4] : memref<1x4xf32, #tpu.memory_space<vmem>>, vector<1x4xf32>
    %4 = vector.broadcast %3 : vector<1x4xf32> to vector<512x4xf32>
    %5 = arith.addf %2, %4 : vector<512x4xf32>
    %cst_5 = arith.constant 0.000000e+00 : f32
    %6 = vector.broadcast %cst_5 : f32 to vector<512x4xf32>
    %7 = arith.maximumf %5, %6 : vector<512x4xf32>
    %c0_6 = arith.constant 0 : index
    %c0_7 = arith.constant 0 : index
    %8 = vector.load %arg4[%c0_6, %c0_7] : memref<512x4xf32, #tpu.memory_space<vmem>>, vector<512x4xf32>
    tpu.vector_store %arg4[%c0_6, %c0_7], %7 {strides = array<i32>} : memref<512x4xf32, #tpu.memory_space<vmem>>, vector<512x4xf32>,
    return
  }
  func.func @transform_0(%arg0: i32) -> (i32, i32) {
    %c0_i32 = arith.constant 0 : i32
    %c0_i32_0 = arith.constant 0 : i32
    return %arg0, %c0_i32 : i32, i32
  }
  func.func @transform_1(%arg0: i32) -> (i32, i32) {
    %c0_i32 = arith.constant 0 : i32
    %c0_i32_0 = arith.constant 0 : i32
    %c0_i32_1 = arith.constant 0 : i32
    return %c0_i32, %c0_i32_0 : i32, i32
  }
  func.func @transform_2(%arg0: i32) -> (i32, i32) {
    %c0_i32 = arith.constant 0 : i32
    %c0_i32_0 = arith.constant 0 : i32
    %c0_i32_1 = arith.constant 0 : i32
    return %c0_i32, %c0_i32_0 : i32, i32
  }
  func.func @transform_3(%arg0: i32) -> (i32, i32) {
    %c0_i32 = arith.constant 0 : i32
    %c0_i32_0 = arith.constant 0 : i32
    return %arg0, %c0_i32 : i32, i32
  }
}

</mosaic_0001>

<llo_original>
// kernel: tpu_custom_call.1
$region0: #{tpu_custom_call.1}
  #allocation0 [shape = 'u32[]', space=smem, size = 0x4, offset = 0x4, fixed_abs, tag = 'smem constant byte address 0x4 - core index']
  #allocation1 [shape = 'u32[144,128]{1,0:T(1,128)}', space=vmem, size = 0x12000, scoped, tag = 'internal scratch']
  %s0 = inlined_call_operand.vmem [shape: f32[512,4], index: 0, kind: input, shape index: {}]
  %s1 = inlined_call_operand.vmem [shape: f32[4,4], index: 1, kind: input, shape index: {}]
  %s2 = inlined_call_operand.vmem [shape: f32[1,4], index: 2, kind: input, shape index: {}]
  %s3 = inlined_call_operand.vmem [shape: f32[512,4], index: 3, kind: output, shape index: {}]
  %s4 = sld [smem:[#allocation0]]
  $region22: #{tpu_custom_call.1} parent=0
    _
  %s6 = ssub.s32 1, %s4
  %s7 = scalar_select 0, %s6, %s4
  // Predicated region
  $region2: #{tpu_custom_call.1} parent=0 // pred_check
    _
  $region3: #{tpu_custom_call.1} parent=0 // pred_check_branch
    %9 = sbr.rel (0) target = $region5
  $region4: #{tpu_custom_call.1} parent=0 // pred_region
    _
  $region5: #{tpu_custom_call.1} parent=0 // pred_fallthru
    _
  // Predicated region
  $region6: #{tpu_custom_call.1} parent=0 // pred_check
    _
  $region7: #{tpu_custom_call.1} parent=0 // pred_check_branch
    %11 = sbr.rel (0) target = $region9
  $region8: #{tpu_custom_call.1} parent=0 // pred_region
    _
  $region9: #{tpu_custom_call.1} parent=0 // pred_fallthru
    _
  // Predicated region
  $region10: #{tpu_custom_call.1} parent=0 // pred_check
    _
  $region11: #{tpu_custom_call.1} parent=0 // pred_check_branch
    %13 = sbr.rel (0) target = $region13
  $region12: #{tpu_custom_call.1} parent=0 // pred_region
    _
  $region13: #{tpu_custom_call.1} parent=0 // pred_fallthru
    _
  %v14 = vld [vmem:[%s0] sm:$0xff]
  %v15 = vld [vmem:[%s0 + $0x8] sm:$0xff]
  %v16 = vld [vmem:[%s0 + $0x10] sm:$0xff]
  %v17 = vld [vmem:[%s0 + $0x18] sm:$0xff]
  %v18 = vld [vmem:[%s0 + $0x20] sm:$0xff]
  %v19 = vld [vmem:[%s0 + $0x28] sm:$0xff]
  %v20 = vld [vmem:[%s0 + $0x30] sm:$0xff]
  %v21 = vld [vmem:[%s0 + $0x38] sm:$0xff]
  %v22 = vld [vmem:[%s0 + $0x40] sm:$0xff]
  %v23 = vld [vmem:[%s0 + $0x48] sm:$0xff]
  %v24 = vld [vmem:[%s0 + $0x50] sm:$0xff]
  %v25 = vld [vmem:[%s0 + $0x58] sm:$0xff]
  %v26 = vld [vmem:[%s0 + $0x60] sm:$0xff]
  %v27 = vld [vmem:[%s0 + $0x68] sm:$0xff]
  %v28 = vld [vmem:[%s0 + $0x70] sm:$0xff]
  %v29 = vld [vmem:[%s0 + $0x78] sm:$0xff]
  %v30 = vld [vmem:[%s0 + $0x80] sm:$0xff]
  %v31 = vld [vmem:[%s0 + $0x88] sm:$0xff]
  %v32 = vld [vmem:[%s0 + $0x90] sm:$0xff]
  %v33 = vld [vmem:[%s0 + $0x98] sm:$0xff]
  %v34 = vld [vmem:[%s0 + $0xa0] sm:$0xff]
  %v35 = vld [vmem:[%s0 + $0xa8] sm:$0xff]
  %v36 = vld [vmem:[%s0 + $0xb0] sm:$0xff]
  %v37 = vld [vmem:[%s0 + $0xb8] sm:$0xff]
  %v38 = vld [vmem:[%s0 + $0xc0] sm:$0xff]
  %v39 = vld [vmem:[%s0 + $0xc8] sm:$0xff]
  %v40 = vld [vmem:[%s0 + $0xd0] sm:$0xff]
  %v41 = vld [vmem:[%s0 + $0xd8] sm:$0xff]
  %v42 = vld [vmem:[%s0 + $0xe0] sm:$0xff]
  %v43 = vld [vmem:[%s0 + $0xe8] sm:$0xff]
  %v44 = vld [vmem:[%s0 + $0xf0] sm:$0xff]
  %v45 = vld [vmem:[%s0 + $0xf8] sm:$0xff]
  %v46 = vld [vmem:[%s0 + $0x100] sm:$0xff]
  %v47 = vld [vmem:[%s0 + $0x108] sm:$0xff]
  %v48 = vld [vmem:[%s0 + $0x110] sm:$0xff]
  %v49 = vld [vmem:[%s0 + $0x118] sm:$0xff]
  %v50 = vld [vmem:[%s0 + $0x120] sm:$0xff]
  %v51 = vld [vmem:[%s0 + $0x128] sm:$0xff]
  %v52 = vld [vmem:[%s0 + $0x130] sm:$0xff]
  %v53 = vld [vmem:[%s0 + $0x138] sm:$0xff]
  %v54 = vld [vmem:[%s0 + $0x140] sm:$0xff]
  %v55 = vld [vmem:[%s0 + $0x148] sm:$0xff]
  %v56 = vld [vmem:[%s0 + $0x150] sm:$0xff]
  %v57 = vld [vmem:[%s0 + $0x158] sm:$0xff]
  %v58 = vld [vmem:[%s0 + $0x160] sm:$0xff]
  %v59 = vld [vmem:[%s0 + $0x168] sm:$0xff]
  %v60 = vld [vmem:[%s0 + $0x170] sm:$0xff]
  %v61 = vld [vmem:[%s0 + $0x178] sm:$0xff]
  %v62 = vld [vmem:[%s0 + $0x180] sm:$0xff]
  %v63 = vld [vmem:[%s0 + $0x188] sm:$0xff]
  %v64 = vld [vmem:[%s0 + $0x190] sm:$0xff]
  %v65 = vld [vmem:[%s0 + $0x198] sm:$0xff]
  %v66 = vld [vmem:[%s0 + $0x1a0] sm:$0xff]
  %v67 = vld [vmem:[%s0 + $0x1a8] sm:$0xff]
  %v68 = vld [vmem:[%s0 + $0x1b0] sm:$0xff]
  %v69 = vld [vmem:[%s0 + $0x1b8] sm:$0xff]
  %v70 = vld [vmem:[%s0 + $0x1c0] sm:$0xff]
  %v71 = vld [vmem:[%s0 + $0x1c8] sm:$0xff]
  %v72 = vld [vmem:[%s0 + $0x1d0] sm:$0xff]
  %v73 = vld [vmem:[%s0 + $0x1d8] sm:$0xff]
  %v74 = vld [vmem:[%s0 + $0x1e0] sm:$0xff]
  %v75 = vld [vmem:[%s0 + $0x1e8] sm:$0xff]
  %v76 = vld [vmem:[%s0 + $0x1f0] sm:$0xff]
  %v77 = vld [vmem:[%s0 + $0x1f8] sm:$0xff]
  %v78 = vld [vmem:[%s1] sm:$0xf]
  %v79 = vld [vmem:[%s2] sm:$0x1]
  %v81 = vlaneseq
  %v82 = vshrl.u32 %v81, 7
  %v83 = vsub.s32 0, %v82
  %v84 = vrot.slane %v79, %v83
  %vm86 = vcmask 31744
  %v88 = vsel %vm86, %v14, 0
  %v91 = vsel %vm86, %v15, 0
  %v94 = vsel %vm86, %v16, 0
  %v97 = vsel %vm86, %v17, 0
  %v100 = vsel %vm86, %v18, 0
  %v103 = vsel %vm86, %v19, 0
  %v106 = vsel %vm86, %v20, 0
  %v109 = vsel %vm86, %v21, 0
  %v112 = vsel %vm86, %v22, 0
  %v115 = vsel %vm86, %v23, 0
  %v118 = vsel %vm86, %v24, 0
  %v121 = vsel %vm86, %v25, 0
  %v124 = vsel %vm86, %v26, 0
  %v127 = vsel %vm86, %v27, 0
  %v130 = vsel %vm86, %v28, 0
  %v133 = vsel %vm86, %v29, 0
  %v136 = vsel %vm86, %v30, 0
  %v139 = vsel %vm86, %v31, 0
  %v142 = vsel %vm86, %v32, 0
  %v145 = vsel %vm86, %v33, 0
  %v148 = vsel %vm86, %v34, 0
  %v151 = vsel %vm86, %v35, 0
  %v154 = vsel %vm86, %v36, 0
  %v157 = vsel %vm86, %v37, 0
  %v160 = vsel %vm86, %v38, 0
  %v163 = vsel %vm86, %v39, 0
  %v166 = vsel %vm86, %v40, 0
  %v169 = vsel %vm86, %v41, 0
  %v172 = vsel %vm86, %v42, 0
  %v175 = vsel %vm86, %v43, 0
  %v178 = vsel %vm86, %v44, 0
  %v181 = vsel %vm86, %v45, 0
  %v184 = vsel %vm86, %v46, 0
  %v187 = vsel %vm86, %v47, 0
  %v190 = vsel %vm86, %v48, 0
  %v193 = vsel %vm86, %v49, 0
  %v196 = vsel %vm86, %v50, 0
  %v199 = vsel %vm86, %v51, 0
  %v202 = vsel %vm86, %v52, 0
  %v205 = vsel %vm86, %v53, 0
  %v208 = vsel %vm86, %v54, 0
  %v211 = vsel %vm86, %v55, 0
  %v214 = vsel %vm86, %v56, 0
  %v217 = vsel %vm86, %v57, 0
  %v220 = vsel %vm86, %v58, 0
  %v223 = vsel %vm86, %v59, 0
  %v226 = vsel %vm86, %v60, 0
  %v229 = vsel %vm86, %v61, 0
  %v232 = vsel %vm86, %v62, 0
  %v235 = vsel %vm86, %v63, 0
  %v238 = vsel %vm86, %v64, 0
  %v241 = vsel %vm86, %v65, 0
  %v244 = vsel %vm86, %v66, 0
  %v247 = vsel %vm86, %v67, 0
  %v250 = vsel %vm86, %v68, 0
  %v253 = vsel %vm86, %v69, 0
  %v256 = vsel %vm86, %v70, 0
  %v259 = vsel %vm86, %v71, 0
  %v262 = vsel %vm86, %v72, 0
  %v265 = vsel %vm86, %v73, 0
  %v268 = vsel %vm86, %v74, 0
  %v271 = vsel %vm86, %v75, 0
  %v274 = vsel %vm86, %v76, 0
  %v277 = vsel %vm86, %v77, 0
  %vm279 = vcmask 1043456
  %v281 = vsel %vm279, %v78, 0
  %283 = vmatprep.subr.mxu0 0.0
  %284 = vmatpush1.msra.mxu0 0.0
  %285 = vmatprep.subr.mxu0 0.0
  %286 = vmatpush1.msra.mxu0 0.0
  %287 = vmatprep.subr.mxu0 0.0
  %288 = vmatpush1.msra.mxu0 0.0
  %289 = vmatprep.subr.mxu0 0.0
  %290 = vmatpush1.msra.mxu0 0.0
  %291 = vmatprep.subr.mxu0 0.0
  %292 = vmatpush1.msra.mxu0 0.0
  %293 = vmatprep.subr.mxu0 0.0
  %294 = vmatpush1.msra.mxu0 0.0
  %295 = vmatprep.subr.mxu0 0.0
  %296 = vmatpush1.msra.mxu0 0.0
  %297 = vmatprep.subr.mxu0 0.0
  %298 = vmatpush1.msra.mxu0 0.0
  %299 = vmatprep.subr.mxu0 0.0
  %300 = vmatpush1.msra.mxu0 0.0
  %301 = vmatprep.subr.mxu0 0.0
  %302 = vmatpush1.msra.mxu0 0.0
  %303 = vmatprep.subr.mxu0 0.0
  %304 = vmatpush1.msra.mxu0 0.0
  %305 = vmatprep.subr.mxu0 0.0
  %306 = vmatpush1.msra.mxu0 0.0
  %307 = vmatprep.subr.mxu0 0.0
  %308 = vmatpush1.msra.mxu0 0.0
  %309 = vmatprep.subr.mxu0 0.0
  %310 = vmatpush1.msra.mxu0 0.0
  %311 = vmatprep.subr.mxu0 0.0
  %312 = vmatpush1.msra.mxu0 0.0
  %313 = vmatprep.subr.mxu0 0.0
  %314 = vmatpush1.msra.mxu0 %v281
  %315 = vmatprep.subr.mxu0 0.0
  %316 = vmatpush2.msra.mxu0 0.0
  %317 = vmatprep.subr.mxu0 0.0
  %318 = vmatpush2.msra.mxu0 0.0
  %319 = vmatprep.subr.mxu0 0.0
  %320 = vmatpush2.msra.mxu0 0.0
  %321 = vmatprep.subr.mxu0 0.0
  %322 = vmatpush2.msra.mxu0 0.0
  %323 = vmatprep.subr.mxu0 0.0
  %324 = vmatpush2.msra.mxu0 0.0
  %325 = vmatprep.subr.mxu0 0.0
  %326 = vmatpush2.msra.mxu0 0.0
  %327 = vmatprep.subr.mxu0 0.0
  %328 = vmatpush2.msra.mxu0 0.0
  %329 = vmatprep.subr.mxu0 0.0
  %330 = vmatpush2.msra.mxu0 0.0
  %331 = vmatprep.subr.mxu0 0.0
  %332 = vmatpush2.msra.mxu0 0.0
  %333 = vmatprep.subr.mxu0 0.0
  %334 = vmatpush2.msra.mxu0 0.0
  %335 = vmatprep.subr.mxu0 0.0
  %336 = vmatpush2.msra.mxu0 0.0
  %337 = vmatprep.subr.mxu0 0.0
  %338 = vmatpush2.msra.mxu0 0.0
  %339 = vmatprep.subr.mxu0 0.0
  %340 = vmatpush2.msra.mxu0 0.0
  %341 = vmatprep.subr.mxu0 0.0
  %342 = vmatpush2.msra.mxu0 0.0
  %343 = vmatprep.subr.mxu0 0.0
  %344 = vmatpush2.msra.mxu0 0.0
  %345 = vmatprep.subr.mxu0 0.0
  %346 = vmatpush2.msra.mxu0 0.0
  %347 = vmatprep.mubr.f32.mxu0 0.0
  %348 = vmatmul.mubr.f32.gmra.mxu0 %v88
  %v349 = vpop.f32.mrf.mxu0
  %v350 = vadd.f32 %v84, %v349
  %v351 = vpop.f32.mrf.mxu0
  %352 = vmatprep.mubr.f32.mxu0 0.0
  %353 = vmatmul.mubr.f32.gmra.mxu0 %v91
  %v354 = vpop.f32.mrf.mxu0
  %v355 = vadd.f32 %v84, %v354
  %v356 = vpop.f32.mrf.mxu0
  %357 = vmatprep.mubr.f32.mxu0 0.0
  %358 = vmatmul.mubr.f32.gmra.mxu0 %v94
  %v359 = vpop.f32.mrf.mxu0
  %v360 = vadd.f32 %v84, %v359
  %v361 = vpop.f32.mrf.mxu0
  %362 = vmatprep.mubr.f32.mxu0 0.0
  %363 = vmatmul.mubr.f32.gmra.mxu0 %v97
  %v364 = vpop.f32.mrf.mxu0
  %v365 = vadd.f32 %v84, %v364
  %v366 = vpop.f32.mrf.mxu0
  %367 = vmatprep.mubr.f32.mxu0 0.0
  %368 = vmatmul.mubr.f32.gmra.mxu0 %v100
  %v369 = vpop.f32.mrf.mxu0
  %v370 = vadd.f32 %v84, %v369
  %v371 = vpop.f32.mrf.mxu0
  %372 = vmatprep.mubr.f32.mxu0 0.0
  %373 = vmatmul.mubr.f32.gmra.mxu0 %v103
  %v374 = vpop.f32.mrf.mxu0
  %v375 = vadd.f32 %v84, %v374
  %v376 = vpop.f32.mrf.mxu0
  %377 = vmatprep.mubr.f32.mxu0 0.0
  %378 = vmatmul.mubr.f32.gmra.mxu0 %v106
  %v379 = vpop.f32.mrf.mxu0
  %v380 = vadd.f32 %v84, %v379
  %v381 = vpop.f32.mrf.mxu0
  %382 = vmatprep.mubr.f32.mxu0 0.0
  %383 = vmatmul.mubr.f32.gmra.mxu0 %v109
  %v384 = vpop.f32.mrf.mxu0
  %v385 = vadd.f32 %v84, %v384
  %v386 = vpop.f32.mrf.mxu0
  %387 = vmatprep.mubr.f32.mxu0 0.0
  %388 = vmatmul.mubr.f32.gmra.mxu0 %v112
  %v389 = vpop.f32.mrf.mxu0
  %v390 = vadd.f32 %v84, %v389
  %v391 = vpop.f32.mrf.mxu0
  %392 = vmatprep.mubr.f32.mxu0 0.0
  %393 = vmatmul.mubr.f32.gmra.mxu0 %v115
  %v394 = vpop.f32.mrf.mxu0
  %v395 = vadd.f32 %v84, %v394
  %v396 = vpop.f32.mrf.mxu0
  %397 = vmatprep.mubr.f32.mxu0 0.0
  %398 = vmatmul.mubr.f32.gmra.mxu0 %v118
  %v399 = vpop.f32.mrf.mxu0
  %v400 = vadd.f32 %v84, %v399
  %v401 = vpop.f32.mrf.mxu0
  %402 = vmatprep.mubr.f32.mxu0 0.0
  %403 = vmatmul.mubr.f32.gmra.mxu0 %v121
  %v404 = vpop.f32.mrf.mxu0
  %v405 = vadd.f32 %v84, %v404
  %v406 = vpop.f32.mrf.mxu0
  %407 = vmatprep.mubr.f32.mxu0 0.0
  %408 = vmatmul.mubr.f32.gmra.mxu0 %v124
  %v409 = vpop.f32.mrf.mxu0
  %v410 = vadd.f32 %v84, %v409
  %v411 = vpop.f32.mrf.mxu0
  %412 = vmatprep.mubr.f32.mxu0 0.0
  %413 = vmatmul.mubr.f32.gmra.mxu0 %v127
  %v414 = vpop.f32.mrf.mxu0
  %v415 = vadd.f32 %v84, %v414
  %v416 = vpop.f32.mrf.mxu0
  %417 = vmatprep.mubr.f32.mxu0 0.0
  %418 = vmatmul.mubr.f32.gmra.mxu0 %v130
  %v419 = vpop.f32.mrf.mxu0
  %v420 = vadd.f32 %v84, %v419
  %v421 = vpop.f32.mrf.mxu0
  %422 = vmatprep.mubr.f32.mxu0 0.0
  %423 = vmatmul.mubr.f32.gmra.mxu0 %v133
  %v424 = vpop.f32.mrf.mxu0
  %v425 = vadd.f32 %v84, %v424
  %v426 = vpop.f32.mrf.mxu0
  %427 = vmatprep.mubr.f32.mxu0 0.0
  %428 = vmatmul.mubr.f32.gmra.mxu0 %v136
  %v429 = vpop.f32.mrf.mxu0
  %v430 = vadd.f32 %v84, %v429
  %v431 = vpop.f32.mrf.mxu0
  %432 = vmatprep.mubr.f32.mxu0 0.0
  %433 = vmatmul.mubr.f32.gmra.mxu0 %v139
  %v434 = vpop.f32.mrf.mxu0
  %v435 = vadd.f32 %v84, %v434
  %v436 = vpop.f32.mrf.mxu0
  %437 = vmatprep.mubr.f32.mxu0 0.0
  %438 = vmatmul.mubr.f32.gmra.mxu0 %v142
  %v439 = vpop.f32.mrf.mxu0
  %v440 = vadd.f32 %v84, %v439
  %v441 = vpop.f32.mrf.mxu0
  %442 = vmatprep.mubr.f32.mxu0 0.0
  %443 = vmatmul.mubr.f32.gmra.mxu0 %v145
  %v444 = vpop.f32.mrf.mxu0
  %v445 = vadd.f32 %v84, %v444
  %v446 = vpop.f32.mrf.mxu0
  %447 = vmatprep.mubr.f32.mxu0 0.0
  %448 = vmatmul.mubr.f32.gmra.mxu0 %v148
  %v449 = vpop.f32.mrf.mxu0
  %v450 = vadd.f32 %v84, %v449
  %v451 = vpop.f32.mrf.mxu0
  %452 = vmatprep.mubr.f32.mxu0 0.0
  %453 = vmatmul.mubr.f32.gmra.mxu0 %v151
  %v454 = vpop.f32.mrf.mxu0
  %v455 = vadd.f32 %v84, %v454
  %v456 = vpop.f32.mrf.mxu0
  %457 = vmatprep.mubr.f32.mxu0 0.0
  %458 = vmatmul.mubr.f32.gmra.mxu0 %v154
  %v459 = vpop.f32.mrf.mxu0
  %v460 = vadd.f32 %v84, %v459
  %v461 = vpop.f32.mrf.mxu0
  %462 = vmatprep.mubr.f32.mxu0 0.0
  %463 = vmatmul.mubr.f32.gmra.mxu0 %v157
  %v464 = vpop.f32.mrf.mxu0
  %v465 = vadd.f32 %v84, %v464
  %v466 = vpop.f32.mrf.mxu0
  %467 = vmatprep.mubr.f32.mxu0 0.0
  %468 = vmatmul.mubr.f32.gmra.mxu0 %v160
  %v469 = vpop.f32.mrf.mxu0
  %v470 = vadd.f32 %v84, %v469
  %v471 = vpop.f32.mrf.mxu0
  %472 = vmatprep.mubr.f32.mxu0 0.0
  %473 = vmatmul.mubr.f32.gmra.mxu0 %v163
  %v474 = vpop.f32.mrf.mxu0
  %v475 = vadd.f32 %v84, %v474
  %v476 = vpop.f32.mrf.mxu0
  %477 = vmatprep.mubr.f32.mxu0 0.0
  %478 = vmatmul.mubr.f32.gmra.mxu0 %v166
  %v479 = vpop.f32.mrf.mxu0
  %v480 = vadd.f32 %v84, %v479
  %v481 = vpop.f32.mrf.mxu0
  %482 = vmatprep.mubr.f32.mxu0 0.0
  %483 = vmatmul.mubr.f32.gmra.mxu0 %v169
  %v484 = vpop.f32.mrf.mxu0
  %v485 = vadd.f32 %v84, %v484
  %v486 = vpop.f32.mrf.mxu0
  %487 = vmatprep.mubr.f32.mxu0 0.0
  %488 = vmatmul.mubr.f32.gmra.mxu0 %v172
  %v489 = vpop.f32.mrf.mxu0
  %v490 = vadd.f32 %v84, %v489
  %v491 = vpop.f32.mrf.mxu0
  %492 = vmatprep.mubr.f32.mxu0 0.0
  %493 = vmatmul.mubr.f32.gmra.mxu0 %v175
  %v494 = vpop.f32.mrf.mxu0
  %v495 = vadd.f32 %v84, %v494
  %v496 = vpop.f32.mrf.mxu0
  %497 = vmatprep.mubr.f32.mxu0 0.0
  %498 = vmatmul.mubr.f32.gmra.mxu0 %v178
  %v499 = vpop.f32.mrf.mxu0
  %v500 = vadd.f32 %v84, %v499
  %v501 = vpop.f32.mrf.mxu0
  %502 = vmatprep.mubr.f32.mxu0 0.0
  %503 = vmatmul.mubr.f32.gmra.mxu0 %v181
  %v504 = vpop.f32.mrf.mxu0
  %v505 = vadd.f32 %v84, %v504
  %v506 = vpop.f32.mrf.mxu0
  %507 = vmatprep.mubr.f32.mxu0 0.0
  %508 = vmatmul.mubr.f32.gmra.mxu0 %v184
  %v509 = vpop.f32.mrf.mxu0
  %v510 = vadd.f32 %v84, %v509
  %v511 = vpop.f32.mrf.mxu0
  %512 = vmatprep.mubr.f32.mxu0 0.0
  %513 = vmatmul.mubr.f32.gmra.mxu0 %v187
  %v514 = vpop.f32.mrf.mxu0
  %v515 = vadd.f32 %v84, %v514
  %v516 = vpop.f32.mrf.mxu0
  %517 = vmatprep.mubr.f32.mxu0 0.0
  %518 = vmatmul.mubr.f32.gmra.mxu0 %v190
  %v519 = vpop.f32.mrf.mxu0
  %v520 = vadd.f32 %v84, %v519
  %v521 = vpop.f32.mrf.mxu0
  %522 = vmatprep.mubr.f32.mxu0 0.0
  %523 = vmatmul.mubr.f32.gmra.mxu0 %v193
  %v524 = vpop.f32.mrf.mxu0
  %v525 = vadd.f32 %v84, %v524
  %v526 = vpop.f32.mrf.mxu0
  %527 = vmatprep.mubr.f32.mxu0 0.0
  %528 = vmatmul.mubr.f32.gmra.mxu0 %v196
  %v529 = vpop.f32.mrf.mxu0
  %v530 = vadd.f32 %v84, %v529
  %v531 = vpop.f32.mrf.mxu0
  %532 = vmatprep.mubr.f32.mxu0 0.0
  %533 = vmatmul.mubr.f32.gmra.mxu0 %v199
  %v534 = vpop.f32.mrf.mxu0
  %v535 = vadd.f32 %v84, %v534
  %v536 = vpop.f32.mrf.mxu0
  %537 = vmatprep.mubr.f32.mxu0 0.0
  %538 = vmatmul.mubr.f32.gmra.mxu0 %v202
  %v539 = vpop.f32.mrf.mxu0
  %v540 = vadd.f32 %v84, %v539
  %v541 = vpop.f32.mrf.mxu0
  %542 = vmatprep.mubr.f32.mxu0 0.0
  %543 = vmatmul.mubr.f32.gmra.mxu0 %v205
  %v544 = vpop.f32.mrf.mxu0
  %v545 = vadd.f32 %v84, %v544
  %v546 = vpop.f32.mrf.mxu0
  %547 = vmatprep.mubr.f32.mxu0 0.0
  %548 = vmatmul.mubr.f32.gmra.mxu0 %v208
  %v549 = vpop.f32.mrf.mxu0
  %v550 = vadd.f32 %v84, %v549
  %v551 = vpop.f32.mrf.mxu0
  %552 = vmatprep.mubr.f32.mxu0 0.0
  %553 = vmatmul.mubr.f32.gmra.mxu0 %v211
  %v554 = vpop.f32.mrf.mxu0
  %v555 = vadd.f32 %v84, %v554
  %v556 = vpop.f32.mrf.mxu0
  %557 = vmatprep.mubr.f32.mxu0 0.0
  %558 = vmatmul.mubr.f32.gmra.mxu0 %v214
  %v559 = vpop.f32.mrf.mxu0
  %v560 = vadd.f32 %v84, %v559
  %v561 = vpop.f32.mrf.mxu0
  %562 = vmatprep.mubr.f32.mxu0 0.0
  %563 = vmatmul.mubr.f32.gmra.mxu0 %v217
  %v564 = vpop.f32.mrf.mxu0
  %v565 = vadd.f32 %v84, %v564
  %v566 = vpop.f32.mrf.mxu0
  %567 = vmatprep.mubr.f32.mxu0 0.0
  %568 = vmatmul.mubr.f32.gmra.mxu0 %v220
  %v569 = vpop.f32.mrf.mxu0
  %v570 = vadd.f32 %v84, %v569
  %v571 = vpop.f32.mrf.mxu0
  %572 = vmatprep.mubr.f32.mxu0 0.0
  %573 = vmatmul.mubr.f32.gmra.mxu0 %v223
  %v574 = vpop.f32.mrf.mxu0
  %v575 = vadd.f32 %v84, %v574
  %v576 = vpop.f32.mrf.mxu0
  %577 = vmatprep.mubr.f32.mxu0 0.0
  %578 = vmatmul.mubr.f32.gmra.mxu0 %v226
  %v579 = vpop.f32.mrf.mxu0
  %v580 = vadd.f32 %v84, %v579
  %v581 = vpop.f32.mrf.mxu0
  %582 = vmatprep.mubr.f32.mxu0 0.0
  %583 = vmatmul.mubr.f32.gmra.mxu0 %v229
  %v584 = vpop.f32.mrf.mxu0
  %v585 = vadd.f32 %v84, %v584
  %v586 = vpop.f32.mrf.mxu0
  %587 = vmatprep.mubr.f32.mxu0 0.0
  %588 = vmatmul.mubr.f32.gmra.mxu0 %v232
  %v589 = vpop.f32.mrf.mxu0
  %v590 = vadd.f32 %v84, %v589
  %v591 = vpop.f32.mrf.mxu0
  %592 = vmatprep.mubr.f32.mxu0 0.0
  %593 = vmatmul.mubr.f32.gmra.mxu0 %v235
  %v594 = vpop.f32.mrf.mxu0
  %v595 = vadd.f32 %v84, %v594
  %v596 = vpop.f32.mrf.mxu0
  %597 = vmatprep.mubr.f32.mxu0 0.0
  %598 = vmatmul.mubr.f32.gmra.mxu0 %v238
  %v599 = vpop.f32.mrf.mxu0
  %v600 = vadd.f32 %v84, %v599
  %v601 = vpop.f32.mrf.mxu0
  %602 = vmatprep.mubr.f32.mxu0 0.0
  %603 = vmatmul.mubr.f32.gmra.mxu0 %v241
  %v604 = vpop.f32.mrf.mxu0
  %v605 = vadd.f32 %v84, %v604
  %v606 = vpop.f32.mrf.mxu0
  %607 = vmatprep.mubr.f32.mxu0 0.0
  %608 = vmatmul.mubr.f32.gmra.mxu0 %v244
  %v609 = vpop.f32.mrf.mxu0
  %v610 = vadd.f32 %v84, %v609
  %v611 = vpop.f32.mrf.mxu0
  %612 = vmatprep.mubr.f32.mxu0 0.0
  %613 = vmatmul.mubr.f32.gmra.mxu0 %v247
  %v614 = vpop.f32.mrf.mxu0
  %v615 = vadd.f32 %v84, %v614
  %v616 = vpop.f32.mrf.mxu0
  %617 = vmatprep.mubr.f32.mxu0 0.0
  %618 = vmatmul.mubr.f32.gmra.mxu0 %v250
  %v619 = vpop.f32.mrf.mxu0
  %v620 = vadd.f32 %v84, %v619
  %v621 = vpop.f32.mrf.mxu0
  %622 = vmatprep.mubr.f32.mxu0 0.0
  %623 = vmatmul.mubr.f32.gmra.mxu0 %v253
  %v624 = vpop.f32.mrf.mxu0
  %v625 = vadd.f32 %v84, %v624
  %v626 = vpop.f32.mrf.mxu0
  %627 = vmatprep.mubr.f32.mxu0 0.0
  %628 = vmatmul.mubr.f32.gmra.mxu0 %v256
  %v629 = vpop.f32.mrf.mxu0
  %v630 = vadd.f32 %v84, %v629
  %v631 = vpop.f32.mrf.mxu0
  %632 = vmatprep.mubr.f32.mxu0 0.0
  %633 = vmatmul.mubr.f32.gmra.mxu0 %v259
  %v634 = vpop.f32.mrf.mxu0
  %v635 = vadd.f32 %v84, %v634
  %v636 = vpop.f32.mrf.mxu0
  %637 = vmatprep.mubr.f32.mxu0 0.0
  %638 = vmatmul.mubr.f32.gmra.mxu0 %v262
  %v639 = vpop.f32.mrf.mxu0
  %v640 = vadd.f32 %v84, %v639
  %v641 = vpop.f32.mrf.mxu0
  %642 = vmatprep.mubr.f32.mxu0 0.0
  %643 = vmatmul.mubr.f32.gmra.mxu0 %v265
  %v644 = vpop.f32.mrf.mxu0
  %v645 = vadd.f32 %v84, %v644
  %v646 = vpop.f32.mrf.mxu0
  %647 = vmatprep.mubr.f32.mxu0 0.0
  %648 = vmatmul.mubr.f32.gmra.mxu0 %v268
  %v649 = vpop.f32.mrf.mxu0
  %v650 = vadd.f32 %v84, %v649
  %v651 = vpop.f32.mrf.mxu0
  %652 = vmatprep.mubr.f32.mxu0 0.0
  %653 = vmatmul.mubr.f32.gmra.mxu0 %v271
  %v654 = vpop.f32.mrf.mxu0
  %v655 = vadd.f32 %v84, %v654
  %v656 = vpop.f32.mrf.mxu0
  %657 = vmatprep.mubr.f32.mxu0 0.0
  %658 = vmatmul.mubr.f32.gmra.mxu0 %v274
  %v659 = vpop.f32.mrf.mxu0
  %v660 = vadd.f32 %v84, %v659
  %v661 = vpop.f32.mrf.mxu0
  %662 = vmatprep.mubr.f32.mxu0 0.0
  %663 = vmatmul.mubr.f32.gmra.mxu0 %v277
  %v664 = vpop.f32.mrf.mxu0
  %v665 = vadd.f32 %v84, %v664
  %v666 = vpop.f32.mrf.mxu0
  %667 = vdwg.mxu0
  %v668 = vmax.f32 %v350, 0.0
  %v669 = vmax.f32 %v355, 0.0
  %v670 = vmax.f32 %v360, 0.0
  %v671 = vmax.f32 %v365, 0.0
  %v672 = vmax.f32 %v370, 0.0
  %v673 = vmax.f32 %v375, 0.0
  %v674 = vmax.f32 %v380, 0.0
  %v675 = vmax.f32 %v385, 0.0
  %v676 = vmax.f32 %v390, 0.0
  %v677 = vmax.f32 %v395, 0.0
  %v678 = vmax.f32 %v400, 0.0
  %v679 = vmax.f32 %v405, 0.0
  %v680 = vmax.f32 %v410, 0.0
  %v681 = vmax.f32 %v415, 0.0
  %v682 = vmax.f32 %v420, 0.0
  %v683 = vmax.f32 %v425, 0.0
  %v684 = vmax.f32 %v430, 0.0
  %v685 = vmax.f32 %v435, 0.0
  %v686 = vmax.f32 %v440, 0.0
  %v687 = vmax.f32 %v445, 0.0
  %v688 = vmax.f32 %v450, 0.0
  %v689 = vmax.f32 %v455, 0.0
  %v690 = vmax.f32 %v460, 0.0
  %v691 = vmax.f32 %v465, 0.0
  %v692 = vmax.f32 %v470, 0.0
  %v693 = vmax.f32 %v475, 0.0
  %v694 = vmax.f32 %v480, 0.0
  %v695 = vmax.f32 %v485, 0.0
  %v696 = vmax.f32 %v490, 0.0
  %v697 = vmax.f32 %v495, 0.0
  %v698 = vmax.f32 %v500, 0.0
  %v699 = vmax.f32 %v505, 0.0
  %v700 = vmax.f32 %v510, 0.0
  %v701 = vmax.f32 %v515, 0.0
  %v702 = vmax.f32 %v520, 0.0
  %v703 = vmax.f32 %v525, 0.0
  %v704 = vmax.f32 %v530, 0.0
  %v705 = vmax.f32 %v535, 0.0
  %v706 = vmax.f32 %v540, 0.0
  %v707 = vmax.f32 %v545, 0.0
  %v708 = vmax.f32 %v550, 0.0
  %v709 = vmax.f32 %v555, 0.0
  %v710 = vmax.f32 %v560, 0.0
  %v711 = vmax.f32 %v565, 0.0
  %v712 = vmax.f32 %v570, 0.0
  %v713 = vmax.f32 %v575, 0.0
  %v714 = vmax.f32 %v580, 0.0
  %v715 = vmax.f32 %v585, 0.0
  %v716 = vmax.f32 %v590, 0.0
  %v717 = vmax.f32 %v595, 0.0
  %v718 = vmax.f32 %v600, 0.0
  %v719 = vmax.f32 %v605, 0.0
  %v720 = vmax.f32 %v610, 0.0
  %v721 = vmax.f32 %v615, 0.0
  %v722 = vmax.f32 %v620, 0.0
  %v723 = vmax.f32 %v625, 0.0
  %v724 = vmax.f32 %v630, 0.0
  %v725 = vmax.f32 %v635, 0.0
  %v726 = vmax.f32 %v640, 0.0
  %v727 = vmax.f32 %v645, 0.0
  %v728 = vmax.f32 %v650, 0.0
  %v729 = vmax.f32 %v655, 0.0
  %v730 = vmax.f32 %v660, 0.0
  %v731 = vmax.f32 %v665, 0.0
  %732 = vst.msk [vmem:[%s3] sm:$0xff] %vm86, %v668
  %733 = vst.msk [vmem:[%s3 + $0x8] sm:$0xff] %vm86, %v669
  %734 = vst.msk [vmem:[%s3 + $0x10] sm:$0xff] %vm86, %v670
  %735 = vst.msk [vmem:[%s3 + $0x18] sm:$0xff] %vm86, %v671
  %736 = vst.msk [vmem:[%s3 + $0x20] sm:$0xff] %vm86, %v672
  %737 = vst.msk [vmem:[%s3 + $0x28] sm:$0xff] %vm86, %v673
  %738 = vst.msk [vmem:[%s3 + $0x30] sm:$0xff] %vm86, %v674
  %739 = vst.msk [vmem:[%s3 + $0x38] sm:$0xff] %vm86, %v675
  %740 = vst.msk [vmem:[%s3 + $0x40] sm:$0xff] %vm86, %v676
  %741 = vst.msk [vmem:[%s3 + $0x48] sm:$0xff] %vm86, %v677
  %742 = vst.msk [vmem:[%s3 + $0x50] sm:$0xff] %vm86, %v678
  %743 = vst.msk [vmem:[%s3 + $0x58] sm:$0xff] %vm86, %v679
  %744 = vst.msk [vmem:[%s3 + $0x60] sm:$0xff] %vm86, %v680
  %745 = vst.msk [vmem:[%s3 + $0x68] sm:$0xff] %vm86, %v681
  %746 = vst.msk [vmem:[%s3 + $0x70] sm:$0xff] %vm86, %v682
  %747 = vst.msk [vmem:[%s3 + $0x78] sm:$0xff] %vm86, %v683
  %748 = vst.msk [vmem:[%s3 + $0x80] sm:$0xff] %vm86, %v684
  %749 = vst.msk [vmem:[%s3 + $0x88] sm:$0xff] %vm86, %v685
  %750 = vst.msk [vmem:[%s3 + $0x90] sm:$0xff] %vm86, %v686
  %751 = vst.msk [vmem:[%s3 + $0x98] sm:$0xff] %vm86, %v687
  %752 = vst.msk [vmem:[%s3 + $0xa0] sm:$0xff] %vm86, %v688
  %753 = vst.msk [vmem:[%s3 + $0xa8] sm:$0xff] %vm86, %v689
  %754 = vst.msk [vmem:[%s3 + $0xb0] sm:$0xff] %vm86, %v690
  %755 = vst.msk [vmem:[%s3 + $0xb8] sm:$0xff] %vm86, %v691
  %756 = vst.msk [vmem:[%s3 + $0xc0] sm:$0xff] %vm86, %v692
  %757 = vst.msk [vmem:[%s3 + $0xc8] sm:$0xff] %vm86, %v693
  %758 = vst.msk [vmem:[%s3 + $0xd0] sm:$0xff] %vm86, %v694
  %759 = vst.msk [vmem:[%s3 + $0xd8] sm:$0xff] %vm86, %v695
  %760 = vst.msk [vmem:[%s3 + $0xe0] sm:$0xff] %vm86, %v696
  %761 = vst.msk [vmem:[%s3 + $0xe8] sm:$0xff] %vm86, %v697
  %762 = vst.msk [vmem:[%s3 + $0xf0] sm:$0xff] %vm86, %v698
  %763 = vst.msk [vmem:[%s3 + $0xf8] sm:$0xff] %vm86, %v699
  %764 = vst.msk [vmem:[%s3 + $0x100] sm:$0xff] %vm86, %v700
  %765 = vst.msk [vmem:[%s3 + $0x108] sm:$0xff] %vm86, %v701
  %766 = vst.msk [vmem:[%s3 + $0x110] sm:$0xff] %vm86, %v702
  %767 = vst.msk [vmem:[%s3 + $0x118] sm:$0xff] %vm86, %v703
  %768 = vst.msk [vmem:[%s3 + $0x120] sm:$0xff] %vm86, %v704
  %769 = vst.msk [vmem:[%s3 + $0x128] sm:$0xff] %vm86, %v705
  %770 = vst.msk [vmem:[%s3 + $0x130] sm:$0xff] %vm86, %v706
  %771 = vst.msk [vmem:[%s3 + $0x138] sm:$0xff] %vm86, %v707
  %772 = vst.msk [vmem:[%s3 + $0x140] sm:$0xff] %vm86, %v708
  %773 = vst.msk [vmem:[%s3 + $0x148] sm:$0xff] %vm86, %v709
  %774 = vst.msk [vmem:[%s3 + $0x150] sm:$0xff] %vm86, %v710
  %775 = vst.msk [vmem:[%s3 + $0x158] sm:$0xff] %vm86, %v711
  %776 = vst.msk [vmem:[%s3 + $0x160] sm:$0xff] %vm86, %v712
  %777 = vst.msk [vmem:[%s3 + $0x168] sm:$0xff] %vm86, %v713
  %778 = vst.msk [vmem:[%s3 + $0x170] sm:$0xff] %vm86, %v714
  %779 = vst.msk [vmem:[%s3 + $0x178] sm:$0xff] %vm86, %v715
  %780 = vst.msk [vmem:[%s3 + $0x180] sm:$0xff] %vm86, %v716
  %781 = vst.msk [vmem:[%s3 + $0x188] sm:$0xff] %vm86, %v717
  %782 = vst.msk [vmem:[%s3 + $0x190] sm:$0xff] %vm86, %v718
  %783 = vst.msk [vmem:[%s3 + $0x198] sm:$0xff] %vm86, %v719
  %784 = vst.msk [vmem:[%s3 + $0x1a0] sm:$0xff] %vm86, %v720
  %785 = vst.msk [vmem:[%s3 + $0x1a8] sm:$0xff] %vm86, %v721
  %786 = vst.msk [vmem:[%s3 + $0x1b0] sm:$0xff] %vm86, %v722
  %787 = vst.msk [vmem:[%s3 + $0x1b8] sm:$0xff] %vm86, %v723
  %788 = vst.msk [vmem:[%s3 + $0x1c0] sm:$0xff] %vm86, %v724
  %789 = vst.msk [vmem:[%s3 + $0x1c8] sm:$0xff] %vm86, %v725
  %790 = vst.msk [vmem:[%s3 + $0x1d0] sm:$0xff] %vm86, %v726
  %791 = vst.msk [vmem:[%s3 + $0x1d8] sm:$0xff] %vm86, %v727
  %792 = vst.msk [vmem:[%s3 + $0x1e0] sm:$0xff] %vm86, %v728
  %793 = vst.msk [vmem:[%s3 + $0x1e8] sm:$0xff] %vm86, %v729
  %794 = vst.msk [vmem:[%s3 + $0x1f0] sm:$0xff] %vm86, %v730
  %795 = vst.msk [vmem:[%s3 + $0x1f8] sm:$0xff] %vm86, %v731
  // Predicated region
  $region14: #{tpu_custom_call.1} parent=0 // pred_check
    _
  $region15: #{tpu_custom_call.1} parent=0 // pred_check_branch
    %797 = sbr.rel (0) target = $region17
  $region16: #{tpu_custom_call.1} parent=0 // pred_region
    _
  $region17: #{tpu_custom_call.1} parent=0 // pred_fallthru
    _
  // Predicated region
  $region18: #{tpu_custom_call.1} parent=0 // pred_check
    _
  $region19: #{tpu_custom_call.1} parent=0 // pred_check_branch
    %799 = sbr.rel (0) target = $region21
  $region20: #{tpu_custom_call.1} parent=0 // pred_region
    _
  $region21: #{tpu_custom_call.1} parent=0 // pred_fallthru
    _

</llo_original>
